<compile_context>
chip_gen: v5e
topology: v5e:2x2
jax: 0.10.0
libtpu: 0.0.40
codegen_flags: <defaults>
</compile_context>

<pallas_src>
import functools

import jax
import jax.numpy as jnp
from jax.experimental import pallas as pl
from jax.experimental.pallas import tpu as pltpu


def _round_up(x, m):
    return -(-x // m) * m


# ----------------------------- Pallas kernel -------------------------------

def center_regression_kernel(pts_ref, oh_ref,
                             w1, b1, w2, b2, w3, b3,
                             wf1x, wf1o, bf1, wf2, bf2, wf3, bf3,
                             out_ref, gmax_ref,
                             *, n_points, n_tile, needs_mask):
    # pts_ref : (Bt, Nt, 3) bf16   one block of points, channels-last
    # oh_ref  : (Bt, 8)     bf16   one-hot, channel-padded n_classes -> 8
    # out_ref : (Bt, 128)   f32    lane-dense output (real outputs in [:, :3])
    # gmax_ref: (Bt, 256)   f32    running max-pool accumulator (VMEM scratch)
    ni = pl.program_id(1)
    bt, nt, _ = pts_ref.shape

    # ---------------- per-point MLP on the whole (Bt*Nt)-row block -----------
    x = pts_ref[...].astype(jnp.float32)                      # (Bt, Nt, 3)
    w1f = w1[...].astype(jnp.float32)                         # (3, 128)
    # conv1/bn1/relu: K=3 -> cheaper and safer on the VPU than a K=3 MXU matmul.
    h = (x[..., 0:1] * w1f[0:1, :] +
         x[..., 1:2] * w1f[1:2, :] +
         x[..., 2:3] * w1f[2:3, :] + b1[...])                  # (Bt, Nt, 128) f32
    h = jnp.maximum(h, 0.0)
    h = h.reshape(bt * nt, 128).astype(jnp.bfloat16)

    # conv2/bn2/relu  -> (Bt*Nt, 128)
    h = jnp.maximum(
        jnp.dot(h, w2[...], preferred_element_type=jnp.float32) + b2[...], 0.0)
    # conv3/bn3/relu  -> (Bt*Nt, 256)
    h = jnp.maximum(
        jnp.dot(h.astype(jnp.bfloat16), w3[...],
                preferred_element_type=jnp.float32) + b3[...], 0.0)

    # torch.max(x, 2)[0]: max over the points axis (tiled -> running max).
    h = h.reshape(bt, nt, 256)
    if needs_mask:
        # zero-padded point rows must not win the max -> mask them to -inf
        pid = ni * n_tile + jax.lax.broadcasted_iota(jnp.int32, h.shape, 1)
        h = jnp.where(pid < n_points, h, -jnp.inf)
    tile_max = jnp.max(h, axis=1)                              # (Bt, 256) f32

    @pl.when(ni == 0)
    def _():
        gmax_ref[...] = jnp.full_like(gmax_ref, -jnp.inf)

    gmax_ref[...] = jnp.maximum(gmax_ref[...], tile_max)

    # ---------------- FC head, once per batch block (M = Bt) -----------------
    @pl.when(ni == pl.num_programs(1) - 1)
    def _():
        g = gmax_ref[...].astype(jnp.bfloat16)                 # (Bt, 256)
        # concat([g, one_hot]) @ Wfc1 split into two matmuls (avoids a 259-wide
        # lane concat): g @ Wfc1[:256] + one_hot @ Wfc1[256:]
        f = (jnp.dot(g, wf1x[...], preferred_element_type=jnp.float32)
             + jnp.dot(oh_ref[...], wf1o[...], preferred_element_type=jnp.float32)
             + bf1[...])
        f = jnp.maximum(f, 0.0).astype(jnp.bfloat16)           # (Bt, 256)
        f = jnp.maximum(
            jnp.dot(f, wf2[...], preferred_element_type=jnp.float32) + bf2[...],
            0.0).astype(jnp.bfloat16)                          # (Bt, 128)
        out_ref[...] = (
            jnp.dot(f, wf3[...], preferred_element_type=jnp.float32) + bf3[...])


# ----------------------------- parameter setup -----------------------------

def init_params(key, n_classes=3, eps=1e-5):
    """Parameters mirroring the PyTorch module's shapes, stored (in, out).

    Conv1d(k=1)/Linear weights use U(-1/sqrt(fan_in), 1/sqrt(fan_in)).
    BatchNorm (eval mode, fresh stats) is folded: scale = 1/sqrt(1 + eps).
    Weights are cast to bf16; biases kept f32.

    NOTE: the PyTorch module zero-inits fc3 (output at init is exactly zero);
    we use a small random fc3 here so the numeric check in __main__ is
    meaningful.  Set wf3/bf3 to zero to reproduce the module's init exactly.
    """
    ks = jax.random.split(key, 12)

    def uni(k, shape, fan_in):
        bound = 1.0 / (fan_in ** 0.5)
        return jax.random.uniform(k, shape, jnp.float32, -bound, bound)

    w1, b1 = uni(ks[0], (3, 128), 3),     uni(ks[1], (1, 128), 3)
    w2, b2 = uni(ks[2], (128, 128), 128), uni(ks[3], (1, 128), 128)
    w3, b3 = uni(ks[4], (128, 256), 128), uni(ks[5], (1, 256), 128)
    fin = 256 + n_classes
    wf1, bf1 = uni(ks[6], (fin, 256), fin), uni(ks[7], (1, 256), fin)
    wf2, bf2 = uni(ks[8], (256, 128), 256), uni(ks[9], (1, 128), 256)
    wf3, bf3 = uni(ks[10], (128, 3), 128), uni(ks[11], (1, 3), 128)

    # Fold eval-mode BN (gamma=1, beta=0, running_mean=0, running_var=1).
    s = 1.0 / jnp.sqrt(1.0 + eps)
    w1, b1 = w1 * s, b1 * s        # bn1
    w2, b2 = w2 * s, b2 * s        # bn2
    w3, b3 = w3 * s, b3 * s        # bn3
    wf1, bf1 = wf1 * s, bf1 * s    # fcbn1
    wf2, bf2 = wf2 * s, bf2 * s    # fcbn2

    # Split fc1 into point-feature / one-hot parts; pad the tiny dims.
    wf1x = wf1[:256]                                                  # (256, 256)
    wf1o = jnp.zeros((8, 256), jnp.float32).at[:n_classes].set(wf1[256:])
    # Lane-dense output head: pad fc3 3 -> 128 output channels with zeros.
    wf3p = jnp.zeros((128, 128), jnp.float32).at[:, :3].set(wf3)
    bf3p = jnp.zeros((1, 128), jnp.float32).at[:, :3].set(bf3)

    bf16 = jnp.bfloat16
    return (w1.astype(bf16), b1,
            w2.astype(bf16), b2,
            w3.astype(bf16), b3,
            wf1x.astype(bf16), wf1o.astype(bf16), bf1,
            wf2.astype(bf16), bf2,
            wf3p.astype(bf16), bf3p)


# ------------------------------- wrapper ------------------------------------

def center_regression_net(pts_ncn, one_hot, params, *, block_b=8, block_n=256):
    """pts_ncn: (B, 3, N) float32 (PyTorch Conv1d layout); one_hot: (B, n_classes)."""
    B, C, N = pts_ncn.shape
    assert C == 3
    n_classes = one_hot.shape[1]
    assert n_classes <= 8

    # ---- batch blocking (Bt rows per grid step) ----
    if B >= block_b:
        bt = block_b                          # multiple of 8
        b_pad = _round_up(B, bt)
    else:
        bt = B                                # single batch block == full dim
        b_pad = B

    # ---- point tiling (Nt multiple of 16 for clean bf16 sublane packing) ----
    n_pad16 = _round_up(N, 16)
    if n_pad16 <= block_n:
        nt = n_pad16
        n_pad = n_pad16
    else:
        nt = block_n                          # block_n is a multiple of 16
        n_pad = _round_up(N, nt)
    needs_mask = (n_pad != N)

    # Channels-last bf16, keeping the real 3-wide channel dim (no padded HBM copy).
    pts = jnp.transpose(pts_ncn, (0, 2, 1)).astype(jnp.bfloat16)       # (B, N, 3)
    if b_pad != B or n_pad != N:
        pts = jnp.pad(pts, ((0, b_pad - B), (0, n_pad - N), (0, 0)))
    oh = jnp.pad(one_hot, ((0, b_pad - B), (0, 8 - n_classes))).astype(jnp.bfloat16)

    grid = (b_pad // bt, n_pad // nt)

    in_specs = [
        pl.BlockSpec((bt, nt, 3), lambda bi, ni: (bi, ni, 0)),   # point block
        pl.BlockSpec((bt, 8), lambda bi, ni: (bi, 0)),           # one-hot block
    ] + [pl.BlockSpec(p.shape, lambda bi, ni: (0, 0)) for p in params]  # weights

    kernel = functools.partial(center_regression_kernel,
                               n_points=N, n_tile=nt, needs_mask=needs_mask)

    out = pl.pallas_call(
        kernel,
        out_shape=jax.ShapeDtypeStruct((b_pad, 128), jnp.float32),  # lane-dense
        grid=grid,
        in_specs=in_specs,
        out_specs=pl.BlockSpec((bt, 128), lambda bi, ni: (bi, 0)),
        scratch_shapes=[pltpu.VMEM((bt, 256), jnp.float32)],        # running max
        compiler_params=pltpu.CompilerParams(
            dimension_semantics=("parallel", "arbitrary")),
    )(pts, oh, *params)

    return out[:B, :3]


# ------------------------------ reference -----------------------------------

def reference(pts_ncn, one_hot, params):
    (w1, b1, w2, b2, w3, b3, wf1x, wf1o, bf1, wf2, bf2, wf3p, bf3p) = [
        jnp.asarray(p, jnp.float32) for p in params]
    n_classes = one_hot.shape[1]
    x = jnp.transpose(pts_ncn, (0, 2, 1)).astype(jnp.bfloat16).astype(jnp.float32)
    oh = jnp.pad(one_hot, ((0, 0), (0, 8 - n_classes))).astype(jnp.bfloat16)
    oh = oh.astype(jnp.float32)
    h = jax.nn.relu(jnp.einsum('bnc,cd->bnd', x, w1) + b1)
    h = jax.nn.relu(jnp.einsum('bnc,cd->bnd', h, w2) + b2)
    h = jax.nn.relu(jnp.einsum('bnc,cd->bnd', h, w3) + b3)
    g = jnp.max(h, axis=1)                                       # (B, 256)
    f = jax.nn.relu(g @ wf1x + oh @ wf1o + bf1)
    f = jax.nn.relu(f @ wf2 + bf2)
    return (f @ wf3p + bf3p)[:, :3]


# --------------------------------- main --------------------------------------

if __name__ == "__main__":
    key = jax.random.PRNGKey(0)
    k_pts, k_oh, k_par = jax.random.split(key, 3)

    B, N, n_classes = 2, 16, 3
    pts = jax.random.normal(k_pts, (B, 3, N), jnp.float32)       # PyTorch (B, C, N)
    one_hot = jax.nn.one_hot(
        jax.random.randint(k_oh, (B,), 0, n_classes), n_classes, dtype=jnp.float32)

    params = init_params(k_par, n_classes=n_classes)

    out = center_regression_net(pts, one_hot, params)
    out = jax.block_until_ready(out)

    ref = reference(pts, one_hot, params)
    assert out.shape == (B, 3)
    err = float(jnp.max(jnp.abs(out - ref)))
    scale = float(jnp.max(jnp.abs(ref)))
    assert err <= 2e-2 * max(1.0, scale), (err, scale)

    print("KERNEL_OK")
</pallas_src>

<mosaic_0001>
module attributes {stable_mosaic.version = 11 : i64} {
  func.func @center_regression_kernel(%arg0: i32, %arg1: i32, %arg2: memref<2x16x3xbf16, #tpu.memory_space<vmem>>, %arg3: memref<2x8xbf16, #tpu.memory_space<vmem>>, %arg4: memref<3x128xbf16, #tpu.memory_space<vmem>>, %arg5: memref<1x128xf32, #tpu.memory_space<vmem>>, %arg6: memref<128x128xbf16, #tpu.memory_space<vmem>>, %arg7: memref<1x128xf32, #tpu.memory_space<vmem>>, %arg8: memref<128x256xbf16, #tpu.memory_space<vmem>>, %arg9: memref<1x256xf32, #tpu.memory_space<vmem>>, %arg10: memref<256x256xbf16, #tpu.memory_space<vmem>>, %arg11: memref<8x256xbf16, #tpu.memory_space<vmem>>, %arg12: memref<1x256xf32, #tpu.memory_space<vmem>>, %arg13: memref<256x128xbf16, #tpu.memory_space<vmem>>, %arg14: memref<1x128xf32, #tpu.memory_space<vmem>>, %arg15: memref<128x128xbf16, #tpu.memory_space<vmem>>, %arg16: memref<1x128xf32, #tpu.memory_space<vmem>>, %arg17: memref<2x128xf32, #tpu.memory_space<vmem>>, %arg18: memref<2x256xf32, #tpu.memory_space<vmem>>) attributes {dimension_semantics = [#tpu.dimension_semantics<parallel>, #tpu.dimension_semantics<arbitrary>], iteration_bounds = array<i64: 1, 1>, scalar_prefetch = 0 : i64, scratch_operands = 1 : i64, tpu.core_type = #tpu.core_type<tc>, window_params = [{transform_indices = @transform_0, window_bounds = array<i64: 2, 16, 3>}, {transform_indices = @transform_1, window_bounds = array<i64: 2, 8>}, {pipeline_mode = #tpu.pipeline_mode<synchronous>, transform_indices = @transform_2, window_bounds = array<i64: 3, 128>}, {pipeline_mode = #tpu.pipeline_mode<synchronous>, transform_indices = @transform_3, window_bounds = array<i64: 1, 128>}, {pipeline_mode = #tpu.pipeline_mode<synchronous>, transform_indices = @transform_4, window_bounds = array<i64: 128, 128>}, {pipeline_mode = #tpu.pipeline_mode<synchronous>, transform_indices = @transform_5, window_bounds = array<i64: 1, 128>}, {pipeline_mode = #tpu.pipeline_mode<synchronous>, transform_indices = @transform_6, window_bounds = array<i64: 128, 256>}, {pipeline_mode = #tpu.pipeline_mode<synchronous>, transform_indices = @transform_7, window_bounds = array<i64: 1, 256>}, {pipeline_mode = #tpu.pipeline_mode<synchronous>, transform_indices = @transform_8, window_bounds = array<i64: 256, 256>}, {pipeline_mode = #tpu.pipeline_mode<synchronous>, transform_indices = @transform_9, window_bounds = array<i64: 8, 256>}, {pipeline_mode = #tpu.pipeline_mode<synchronous>, transform_indices = @transform_10, window_bounds = array<i64: 1, 256>}, {pipeline_mode = #tpu.pipeline_mode<synchronous>, transform_indices = @transform_11, window_bounds = array<i64: 256, 128>}, {pipeline_mode = #tpu.pipeline_mode<synchronous>, transform_indices = @transform_12, window_bounds = array<i64: 1, 128>}, {pipeline_mode = #tpu.pipeline_mode<synchronous>, transform_indices = @transform_13, window_bounds = array<i64: 128, 128>}, {pipeline_mode = #tpu.pipeline_mode<synchronous>, transform_indices = @transform_14, window_bounds = array<i64: 1, 128>}, {transform_indices = @transform_15, window_bounds = array<i64: 2, 128>}]} {
    %c0 = arith.constant 0 : index
    %c0_0 = arith.constant 0 : index
    %c0_1 = arith.constant 0 : index
    %0 = vector.load %arg2[%c0, %c0_0, %c0_1] : memref<2x16x3xbf16, #tpu.memory_space<vmem>>, vector<2x16x3xbf16>
    %1 = arith.extf %0 : vector<2x16x3xbf16> to vector<2x16x3xf32>
    %c0_2 = arith.constant 0 : index
    %c0_3 = arith.constant 0 : index
    %2 = vector.load %arg4[%c0_2, %c0_3] : memref<3x128xbf16, #tpu.memory_space<vmem>>, vector<3x128xbf16>
    %3 = arith.extf %2 : vector<3x128xbf16> to vector<3x128xf32>
    %4 = vector.extract_strided_slice %1 {offsets = [0, 0, 0], sizes = [2, 16, 1], strides = [1, 1, 1]} : vector<2x16x3xf32> to vector<2x16x1xf32>
    %5 = vector.extract_strided_slice %3 {offsets = [0, 0], sizes = [1, 128], strides = [1, 1]} : vector<3x128xf32> to vector<1x128xf32>
    %6 = vector.shape_cast %5 : vector<1x128xf32> to vector<1x1x128xf32>
    %7 = vector.broadcast %4 : vector<2x16x1xf32> to vector<2x16x128xf32>
    %8 = vector.broadcast %6 : vector<1x1x128xf32> to vector<2x16x128xf32>
    %9 = arith.mulf %7, %8 : vector<2x16x128xf32>
    %10 = vector.extract_strided_slice %1 {offsets = [0, 0, 1], sizes = [2, 16, 1], strides = [1, 1, 1]} : vector<2x16x3xf32> to vector<2x16x1xf32>
    %11 = vector.extract_strided_slice %3 {offsets = [1, 0], sizes = [1, 128], strides = [1, 1]} : vector<3x128xf32> to vector<1x128xf32>
    %12 = vector.shape_cast %11 : vector<1x128xf32> to vector<1x1x128xf32>
    %13 = vector.broadcast %10 : vector<2x16x1xf32> to vector<2x16x128xf32>
    %14 = vector.broadcast %12 : vector<1x1x128xf32> to vector<2x16x128xf32>
    %15 = arith.mulf %13, %14 : vector<2x16x128xf32>
    %16 = arith.addf %9, %15 : vector<2x16x128xf32>
    %17 = vector.extract_strided_slice %1 {offsets = [0, 0, 2], sizes = [2, 16, 1], strides = [1, 1, 1]} : vector<2x16x3xf32> to vector<2x16x1xf32>
    %18 = vector.extract_strided_slice %3 {offsets = [2, 0], sizes = [1, 128], strides = [1, 1]} : vector<3x128xf32> to vector<1x128xf32>
    %19 = vector.shape_cast %18 : vector<1x128xf32> to vector<1x1x128xf32>
    %20 = vector.broadcast %17 : vector<2x16x1xf32> to vector<2x16x128xf32>
    %21 = vector.broadcast %19 : vector<1x1x128xf32> to vector<2x16x128xf32>
    %22 = arith.mulf %20, %21 : vector<2x16x128xf32>
    %23 = arith.addf %16, %22 : vector<2x16x128xf32>
    %c0_4 = arith.constant 0 : index
    %c0_5 = arith.constant 0 : index
    %24 = vector.load %arg5[%c0_4, %c0_5] : memref<1x128xf32, #tpu.memory_space<vmem>>, vector<1x128xf32>
    %25 = vector.shape_cast %24 : vector<1x128xf32> to vector<1x1x128xf32>
    %26 = vector.broadcast %25 : vector<1x1x128xf32> to vector<2x16x128xf32>
    %27 = arith.addf %23, %26 : vector<2x16x128xf32>
    %cst = arith.constant 0.000000e+00 : f32
    %28 = vector.broadcast %cst : f32 to vector<2x16x128xf32>
    %29 = arith.maximumf %27, %28 : vector<2x16x128xf32>
    %30 = vector.shape_cast %29 : vector<2x16x128xf32> to vector<32x128xf32>
    %31 = arith.truncf %30 : vector<32x128xf32> to vector<32x128xbf16>
    %c0_6 = arith.constant 0 : index
    %c0_7 = arith.constant 0 : index
    %32 = vector.load %arg6[%c0_6, %c0_7] : memref<128x128xbf16, #tpu.memory_space<vmem>>, vector<128x128xbf16>
    %cst_8 = arith.constant dense<0.000000e+00> : vector<32x128xf32>
    %33 = tpu.matmul %31, %32, %cst_8 {dimension_numbers = #tpu.dot_dimension_numbers<[1], [0], [0], [1], [0, 0, 1, 1], [], []>} : vector<32x128xbf16>, vector<128x128xbf16>, vector<32x128xf32> -> vector<32x128xf32>
    %c0_9 = arith.constant 0 : index
    %c0_10 = arith.constant 0 : index
    %34 = vector.load %arg7[%c0_9, %c0_10] : memref<1x128xf32, #tpu.memory_space<vmem>>, vector<1x128xf32>
    %35 = vector.broadcast %34 : vector<1x128xf32> to vector<32x128xf32>
    %36 = arith.addf %33, %35 : vector<32x128xf32>
    %cst_11 = arith.constant 0.000000e+00 : f32
    %37 = vector.broadcast %cst_11 : f32 to vector<32x128xf32>
    %38 = arith.maximumf %36, %37 : vector<32x128xf32>
    %39 = arith.truncf %38 : vector<32x128xf32> to vector<32x128xbf16>
    %c0_12 = arith.constant 0 : index
    %c0_13 = arith.constant 0 : index
    %40 = vector.load %arg8[%c0_12, %c0_13] : memref<128x256xbf16, #tpu.memory_space<vmem>>, vector<128x256xbf16>
    %cst_14 = arith.constant dense<0.000000e+00> : vector<32x256xf32>
    %41 = tpu.matmul %39, %40, %cst_14 {dimension_numbers = #tpu.dot_dimension_numbers<[1], [0], [0], [1], [0, 0, 1, 1], [], []>} : vector<32x128xbf16>, vector<128x256xbf16>, vector<32x256xf32> -> vector<32x256xf32>
    %c0_15 = arith.constant 0 : index
    %c0_16 = arith.constant 0 : index
    %42 = vector.load %arg9[%c0_15, %c0_16] : memref<1x256xf32, #tpu.memory_space<vmem>>, vector<1x256xf32>
    %43 = vector.broadcast %42 : vector<1x256xf32> to vector<32x256xf32>
    %44 = arith.addf %41, %43 : vector<32x256xf32>
    %cst_17 = arith.constant 0.000000e+00 : f32
    %45 = vector.broadcast %cst_17 : f32 to vector<32x256xf32>
    %46 = arith.maximumf %44, %45 : vector<32x256xf32>
    %47 = vector.shape_cast %46 : vector<32x256xf32> to vector<2x16x256xf32>
    %cst_18 = arith.constant dense<0xFF800000> : vector<2x256xf32>
    %48 = vector.multi_reduction <maximumf>, %47, %cst_18 [1] : vector<2x16x256xf32> to vector<2x256xf32>
    %c0_i32 = arith.constant 0 : i32
    %49 = arith.cmpi eq, %arg1, %c0_i32 : i32
    %50 = arith.extui %49 : i1 to i32
    %c0_i32_19 = arith.constant 0 : i32
    %51 = arith.cmpi ne, %50, %c0_i32_19 : i32
    scf.if %51 {
      %cst_26 = arith.constant 0xFF800000 : f32
      %58 = vector.broadcast %cst_26 : f32 to vector<2x256xf32>
      %c0_27 = arith.constant 0 : index
      %c0_28 = arith.constant 0 : index
      %59 = vector.load %arg18[%c0_27, %c0_28] : memref<2x256xf32, #tpu.memory_space<vmem>>, vector<2x256xf32>
      tpu.vector_store %arg18[%c0_27, %c0_28], %58 {strides = array<i32>} : memref<2x256xf32, #tpu.memory_space<vmem>>, vector<2x256xf32>,
    } else {
    }
    %c0_20 = arith.constant 0 : index
    %c0_21 = arith.constant 0 : index
    %52 = vector.load %arg18[%c0_20, %c0_21] : memref<2x256xf32, #tpu.memory_space<vmem>>, vector<2x256xf32>
    %53 = arith.maximumf %52, %48 : vector<2x256xf32>
    %c0_22 = arith.constant 0 : index
    %c0_23 = arith.constant 0 : index
    %54 = vector.load %arg18[%c0_22, %c0_23] : memref<2x256xf32, #tpu.memory_space<vmem>>, vector<2x256xf32>
    tpu.vector_store %arg18[%c0_22, %c0_23], %53 {strides = array<i32>} : memref<2x256xf32, #tpu.memory_space<vmem>>, vector<2x256xf32>,
    %c0_i32_24 = arith.constant 0 : i32
    %55 = arith.cmpi eq, %arg1, %c0_i32_24 : i32
    %56 = arith.extui %55 : i1 to i32
    %c0_i32_25 = arith.constant 0 : i32
    %57 = arith.cmpi ne, %56, %c0_i32_25 : i32
    scf.if %57 {
      %c0_26 = arith.constant 0 : index
      %c0_27 = arith.constant 0 : index
      %58 = vector.load %arg18[%c0_26, %c0_27] : memref<2x256xf32, #tpu.memory_space<vmem>>, vector<2x256xf32>
      %59 = arith.truncf %58 : vector<2x256xf32> to vector<2x256xbf16>
      %c0_28 = arith.constant 0 : index
      %c0_29 = arith.constant 0 : index
      %60 = vector.load %arg10[%c0_28, %c0_29] : memref<256x256xbf16, #tpu.memory_space<vmem>>, vector<256x256xbf16>
      %cst_30 = arith.constant dense<0.000000e+00> : vector<2x256xf32>
      %61 = tpu.matmul %59, %60, %cst_30 {dimension_numbers = #tpu.dot_dimension_numbers<[1], [0], [0], [1], [0, 0, 1, 1], [], []>} : vector<2x256xbf16>, vector<256x256xbf16>, vector<2x256xf32> -> vector<2x256xf32>
      %c0_31 = arith.constant 0 : index
      %c0_32 = arith.constant 0 : index
      %62 = vector.load %arg3[%c0_31, %c0_32] : memref<2x8xbf16, #tpu.memory_space<vmem>>, vector<2x8xbf16>
      %c0_33 = arith.constant 0 : index
      %c0_34 = arith.constant 0 : index
      %63 = vector.load %arg11[%c0_33, %c0_34] : memref<8x256xbf16, #tpu.memory_space<vmem>>, vector<8x256xbf16>
      %cst_35 = arith.constant dense<0.000000e+00> : vector<2x256xf32>
      %64 = tpu.matmul %62, %63, %cst_35 {dimension_numbers = #tpu.dot_dimension_numbers<[1], [0], [0], [1], [0, 0, 1, 1], [], []>} : vector<2x8xbf16>, vector<8x256xbf16>, vector<2x256xf32> -> vector<2x256xf32>
      %65 = arith.addf %61, %64 : vector<2x256xf32>
      %c0_36 = arith.constant 0 : index
      %c0_37 = arith.constant 0 : index
      %66 = vector.load %arg12[%c0_36, %c0_37] : memref<1x256xf32, #tpu.memory_space<vmem>>, vector<1x256xf32>
      %67 = vector.broadcast %66 : vector<1x256xf32> to vector<2x256xf32>
      %68 = arith.addf %65, %67 : vector<2x256xf32>
      %cst_38 = arith.constant 0.000000e+00 : f32
      %69 = vector.broadcast %cst_38 : f32 to vector<2x256xf32>
      %70 = arith.maximumf %68, %69 : vector<2x256xf32>
      %71 = arith.truncf %70 : vector<2x256xf32> to vector<2x256xbf16>
      %c0_39 = arith.constant 0 : index
      %c0_40 = arith.constant 0 : index
      %72 = vector.load %arg13[%c0_39, %c0_40] : memref<256x128xbf16, #tpu.memory_space<vmem>>, vector<256x128xbf16>
      %cst_41 = arith.constant dense<0.000000e+00> : vector<2x128xf32>
      %73 = tpu.matmul %71, %72, %cst_41 {dimension_numbers = #tpu.dot_dimension_numbers<[1], [0], [0], [1], [0, 0, 1, 1], [], []>} : vector<2x256xbf16>, vector<256x128xbf16>, vector<2x128xf32> -> vector<2x128xf32>
      %c0_42 = arith.constant 0 : index
      %c0_43 = arith.constant 0 : index
      %74 = vector.load %arg14[%c0_42, %c0_43] : memref<1x128xf32, #tpu.memory_space<vmem>>, vector<1x128xf32>
      %75 = vector.broadcast %74 : vector<1x128xf32> to vector<2x128xf32>
      %76 = arith.addf %73, %75 : vector<2x128xf32>
      %cst_44 = arith.constant 0.000000e+00 : f32
      %77 = vector.broadcast %cst_44 : f32 to vector<2x128xf32>
      %78 = arith.maximumf %76, %77 : vector<2x128xf32>
      %79 = arith.truncf %78 : vector<2x128xf32> to vector<2x128xbf16>
      %c0_45 = arith.constant 0 : index
      %c0_46 = arith.constant 0 : index
      %80 = vector.load %arg15[%c0_45, %c0_46] : memref<128x128xbf16, #tpu.memory_space<vmem>>, vector<128x128xbf16>
      %cst_47 = arith.constant dense<0.000000e+00> : vector<2x128xf32>
      %81 = tpu.matmul %79, %80, %cst_47 {dimension_numbers = #tpu.dot_dimension_numbers<[1], [0], [0], [1], [0, 0, 1, 1], [], []>} : vector<2x128xbf16>, vector<128x128xbf16>, vector<2x128xf32> -> vector<2x128xf32>
      %c0_48 = arith.constant 0 : index
      %c0_49 = arith.constant 0 : index
      %82 = vector.load %arg16[%c0_48, %c0_49] : memref<1x128xf32, #tpu.memory_space<vmem>>, vector<1x128xf32>
      %83 = vector.broadcast %82 : vector<1x128xf32> to vector<2x128xf32>
      %84 = arith.addf %81, %83 : vector<2x128xf32>
      %c0_50 = arith.constant 0 : index
      %c0_51 = arith.constant 0 : index
      %85 = vector.load %arg17[%c0_50, %c0_51] : memref<2x128xf32, #tpu.memory_space<vmem>>, vector<2x128xf32>
      tpu.vector_store %arg17[%c0_50, %c0_51], %84 {strides = array<i32>} : memref<2x128xf32, #tpu.memory_space<vmem>>, vector<2x128xf32>,
    } else {
    }
    return
  }
  func.func @transform_0(%arg0: i32, %arg1: i32) -> (i32, i32, i32) {
    %c0_i32 = arith.constant 0 : i32
    %c0_i32_0 = arith.constant 0 : i32
    return %arg0, %arg1, %c0_i32 : i32, i32, i32
  }
  func.func @transform_1(%arg0: i32, %arg1: i32) -> (i32, i32) {
    %c0_i32 = arith.constant 0 : i32
    %c0_i32_0 = arith.constant 0 : i32
    return %arg0, %c0_i32 : i32, i32
  }
  func.func @transform_2(%arg0: i32, %arg1: i32) -> (i32, i32) {
    %c0_i32 = arith.constant 0 : i32
    %c0_i32_0 = arith.constant 0 : i32
    %c0_i32_1 = arith.constant 0 : i32
    return %c0_i32, %c0_i32_0 : i32, i32
  }
  func.func @transform_3(%arg0: i32, %arg1: i32) -> (i32, i32) {
    %c0_i32 = arith.constant 0 : i32
    %c0_i32_0 = arith.constant 0 : i32
    %c0_i32_1 = arith.constant 0 : i32
    return %c0_i32, %c0_i32_0 : i32, i32
  }
  func.func @transform_4(%arg0: i32, %arg1: i32) -> (i32, i32) {
    %c0_i32 = arith.constant 0 : i32
    %c0_i32_0 = arith.constant 0 : i32
    %c0_i32_1 = arith.constant 0 : i32
    return %c0_i32, %c0_i32_0 : i32, i32
  }
  func.func @transform_5(%arg0: i32, %arg1: i32) -> (i32, i32) {
    %c0_i32 = arith.constant 0 : i32
    %c0_i32_0 = arith.constant 0 : i32
    %c0_i32_1 = arith.constant 0 : i32
    return %c0_i32, %c0_i32_0 : i32, i32
  }
  func.func @transform_6(%arg0: i32, %arg1: i32) -> (i32, i32) {
    %c0_i32 = arith.constant 0 : i32
    %c0_i32_0 = arith.constant 0 : i32
    %c0_i32_1 = arith.constant 0 : i32
    return %c0_i32, %c0_i32_0 : i32, i32
  }
  func.func @transform_7(%arg0: i32, %arg1: i32) -> (i32, i32) {
    %c0_i32 = arith.constant 0 : i32
    %c0_i32_0 = arith.constant 0 : i32
    %c0_i32_1 = arith.constant 0 : i32
    return %c0_i32, %c0_i32_0 : i32, i32
  }
  func.func @transform_8(%arg0: i32, %arg1: i32) -> (i32, i32) {
    %c0_i32 = arith.constant 0 : i32
    %c0_i32_0 = arith.constant 0 : i32
    %c0_i32_1 = arith.constant 0 : i32
    return %c0_i32, %c0_i32_0 : i32, i32
  }
  func.func @transform_9(%arg0: i32, %arg1: i32) -> (i32, i32) {
    %c0_i32 = arith.constant 0 : i32
    %c0_i32_0 = arith.constant 0 : i32
    %c0_i32_1 = arith.constant 0 : i32
    return %c0_i32, %c0_i32_0 : i32, i32
  }
  func.func @transform_10(%arg0: i32, %arg1: i32) -> (i32, i32) {
    %c0_i32 = arith.constant 0 : i32
    %c0_i32_0 = arith.constant 0 : i32
    %c0_i32_1 = arith.constant 0 : i32
    return %c0_i32, %c0_i32_0 : i32, i32
  }
  func.func @transform_11(%arg0: i32, %arg1: i32) -> (i32, i32) {
    %c0_i32 = arith.constant 0 : i32
    %c0_i32_0 = arith.constant 0 : i32
    %c0_i32_1 = arith.constant 0 : i32
    return %c0_i32, %c0_i32_0 : i32, i32
  }
  func.func @transform_12(%arg0: i32, %arg1: i32) -> (i32, i32) {
    %c0_i32 = arith.constant 0 : i32
    %c0_i32_0 = arith.constant 0 : i32
    %c0_i32_1 = arith.constant 0 : i32
    return %c0_i32, %c0_i32_0 : i32, i32
  }
  func.func @transform_13(%arg0: i32, %arg1: i32) -> (i32, i32) {
    %c0_i32 = arith.constant 0 : i32
    %c0_i32_0 = arith.constant 0 : i32
    %c0_i32_1 = arith.constant 0 : i32
    return %c0_i32, %c0_i32_0 : i32, i32
  }
  func.func @transform_14(%arg0: i32, %arg1: i32) -> (i32, i32) {
    %c0_i32 = arith.constant 0 : i32
    %c0_i32_0 = arith.constant 0 : i32
    %c0_i32_1 = arith.constant 0 : i32
    return %c0_i32, %c0_i32_0 : i32, i32
  }
  func.func @transform_15(%arg0: i32, %arg1: i32) -> (i32, i32) {
    %c0_i32 = arith.constant 0 : i32
    %c0_i32_0 = arith.constant 0 : i32
    return %arg0, %c0_i32 : i32, i32
  }
}

</mosaic_0001>

<llo_original>
// kernel: tpu_custom_call.1
$region0: #{tpu_custom_call.1}
  #allocation0 [shape = 'u32[]', space=smem, size = 0x4, offset = 0x4, fixed_abs, tag = 'smem constant byte address 0x4 - core index']
  #allocation1 [shape = 'u32[72,128]{1,0:T(1,128)}', space=vmem, size = 0x9000, scoped, tag = 'internal scratch']
  #allocation2 [shape = 'f32[2,256]{1,0:T(2,128)}', space=vmem, size = 0x800, scoped, tag = 'scratch operand']
  %s0 = inlined_call_operand.vmem [shape: bf16[2,16,3], index: 0, kind: input, shape index: {}]
  %s1 = inlined_call_operand.vmem [shape: bf16[2,8], index: 1, kind: input, shape index: {}]
  %s2 = inlined_call_operand.vmem [shape: bf16[3,128], index: 2, kind: input, shape index: {}]
  %s3 = inlined_call_operand.vmem [shape: f32[1,128], index: 3, kind: input, shape index: {}]
  %s4 = inlined_call_operand.hbm [shape: bf16[128,128], index: 4, kind: input, shape index: {}]
  %s5 = inlined_call_operand.vmem [shape: f32[1,128], index: 5, kind: input, shape index: {}]
  %s6 = inlined_call_operand.hbm [shape: bf16[128,256], index: 6, kind: input, shape index: {}]
  %s7 = inlined_call_operand.vmem [shape: f32[1,256], index: 7, kind: input, shape index: {}]
  %s8 = inlined_call_operand.hbm [shape: bf16[256,256], index: 8, kind: input, shape index: {}]
  %s9 = inlined_call_operand.vmem [shape: bf16[8,256], index: 9, kind: input, shape index: {}]
  %s10 = inlined_call_operand.vmem [shape: f32[1,256], index: 10, kind: input, shape index: {}]
  %s11 = inlined_call_operand.hbm [shape: bf16[256,128], index: 11, kind: input, shape index: {}]
  %s12 = inlined_call_operand.vmem [shape: f32[1,128], index: 12, kind: input, shape index: {}]
  %s13 = inlined_call_operand.hbm [shape: bf16[128,128], index: 13, kind: input, shape index: {}]
  %s14 = inlined_call_operand.vmem [shape: f32[1,128], index: 14, kind: input, shape index: {}]
  %s15 = inlined_call_operand.hbm [shape: f32[2,128], index: 15, kind: output, shape index: {}]
  %s16 = sld [smem:[#allocation0]]
  $region98: #{tpu_custom_call.1} parent=0
    _
  %s18 = ssub.s32 1, %s16
  %s19 = scalar_select 0, %s18, %s16
  $region1: #{tpu_custom_call.1} parent=0
    #allocation3 [shape = 'u8[32768]{0}', space=vmem, size = 0x8000, scoped, tag = 'input window, operand 4, single buffered']
    #allocation4 [shape = 's32[1]{0}', space=sflag, size = 0x4, scoped, tag = 'scoped memory for tpu_custom_call.1']
    #allocation5 [shape = 's32[1]{0}', space=sflag, size = 0x4, scoped, tag = 'scoped memory for tpu_custom_call.1']
    #allocation6 [shape = 'u8[65536]{0}', space=vmem, size = 0x10000, scoped, tag = 'input window, operand 6, single buffered']
    #allocation7 [shape = 's32[1]{0}', space=sflag, size = 0x4, scoped, tag = 'scoped memory for tpu_custom_call.1']
    #allocation8 [shape = 'u8[131072]{0}', space=vmem, size = 0x20000, scoped, tag = 'input window, operand 8, single buffered']
    #allocation9 [shape = 'u8[65536]{0}', space=vmem, size = 0x10000, scoped, tag = 'input window, operand 11, single buffered']
    #allocation10 [shape = 's32[1]{0}', space=sflag, size = 0x4, scoped, tag = 'scoped memory for tpu_custom_call.1']
    #allocation11 [shape = 'u8[32768]{0}', space=vmem, size = 0x8000, scoped, tag = 'input window, operand 13, single buffered']
    #allocation12 [shape = 'u8[1024]{0}', space=vmem, size = 0x400, scoped, tag = 'output window, operand 0, single buffered']
    %20 = vsyncpa [#allocation4], 0
    %21 = vsyncpa [#allocation7], 0
    %22 = vsyncpa [#allocation10], 0
    %23 = vsyncpa [#allocation5], 0
    // Predicated region
    $region2: #{tpu_custom_call.1} parent=1 // pred_check
      _
    $region3: #{tpu_custom_call.1} parent=1 // pred_check_branch
      %25 = sbr.rel (0) target = $region5
    $region4: #{tpu_custom_call.1} parent=1 // pred_region
      _
    $region5: #{tpu_custom_call.1} parent=1 // pred_fallthru
      _
    // Predicated region
    $region6: #{tpu_custom_call.1} parent=1 // pred_check
      _
    $region7: #{tpu_custom_call.1} parent=1 // pred_check_branch
      %27 = sbr.rel (0) target = $region9
    $region8: #{tpu_custom_call.1} parent=1 // pred_region
      _
    $region9: #{tpu_custom_call.1} parent=1 // pred_fallthru
      _
    // Predicated region
    $region10: #{tpu_custom_call.1} parent=1 // pred_check
      _
    $region11: #{tpu_custom_call.1} parent=1 // pred_check_branch
      %29 = sbr.rel (0) target = $region13
    $region12: #{tpu_custom_call.1} parent=1 // pred_region
      _
    $region13: #{tpu_custom_call.1} parent=1 // pred_fallthru
      _
    // Predicated region
    $region14: #{tpu_custom_call.1} parent=1 // pred_check
      _
    $region15: #{tpu_custom_call.1} parent=1 // pred_check_branch
      %31 = sbr.rel (0) target = $region17
    $region16: #{tpu_custom_call.1} parent=1 // pred_region
      _
    $region17: #{tpu_custom_call.1} parent=1 // pred_fallthru
      _
    // Predicated region
    $region18: #{tpu_custom_call.1} parent=1 // pred_check
      _
    $region19: #{tpu_custom_call.1} parent=1 // pred_check_branch
      %33 = sbr.rel (0) target = $region21
    $region20: #{tpu_custom_call.1} parent=1 // pred_region
      %35 = vsyncadd [#allocation4], 0
      %s36 = sshll.u32 %s4, 4
      %s37 = int_to_ptr.hbm [resolvable:$true] %s36
      %s38 = sshll.u32 [#allocation3], 4
      %s39 = int_to_ptr.vmem [resolvable:$true] %s38
      %44 = dma.hbm_to_vmem [thread:$0]  %s37, 1024, %s39, [#allocation4], 64, 64, 4
    $region21: #{tpu_custom_call.1} parent=1 // pred_fallthru
      _
    // Predicated region
    $region22: #{tpu_custom_call.1} parent=1 // pred_check
      _
    $region23: #{tpu_custom_call.1} parent=1 // pred_check_branch
      %46 = sbr.rel (0) target = $region25
    $region24: #{tpu_custom_call.1} parent=1 // pred_region
      _
    $region25: #{tpu_custom_call.1} parent=1 // pred_fallthru
      _
    // Predicated region
    $region26: #{tpu_custom_call.1} parent=1 // pred_check
      _
    $region27: #{tpu_custom_call.1} parent=1 // pred_check_branch
      %48 = sbr.rel (0) target = $region29
    $region28: #{tpu_custom_call.1} parent=1 // pred_region
      %50 = vsyncadd [#allocation7], 0
      %s51 = sshll.u32 %s6, 4
      %s52 = int_to_ptr.hbm [resolvable:$true] %s51
      %s53 = sshll.u32 [#allocation6], 4
      %s54 = int_to_ptr.vmem [resolvable:$true] %s53
      %59 = dma.hbm_to_vmem [thread:$0]  %s52, 2048, %s54, [#allocation7], 128, 128, 8
    $region29: #{tpu_custom_call.1} parent=1 // pred_fallthru
      _
    // Predicated region
    $region30: #{tpu_custom_call.1} parent=1 // pred_check
      _
    $region31: #{tpu_custom_call.1} parent=1 // pred_check_branch
      %61 = sbr.rel (0) target = $region33
    $region32: #{tpu_custom_call.1} parent=1 // pred_region
      _
    $region33: #{tpu_custom_call.1} parent=1 // pred_fallthru
      _
    // Predicated region
    $region34: #{tpu_custom_call.1} parent=1 // pred_check
      _
    $region35: #{tpu_custom_call.1} parent=1 // pred_check_branch
      %63 = sbr.rel (0) target = $region37
    $region36: #{tpu_custom_call.1} parent=1 // pred_region
      %65 = vsyncadd [#allocation7], 0
      %s66 = sshll.u32 %s8, 4
      %s67 = int_to_ptr.hbm [resolvable:$true] %s66
      %s68 = sshll.u32 [#allocation8], 4
      %s69 = int_to_ptr.vmem [resolvable:$true] %s68
      %74 = dma.hbm_to_vmem [thread:$0]  %s67, 4096, %s69, [#allocation7], 128, 128, 8
    $region37: #{tpu_custom_call.1} parent=1 // pred_fallthru
      _
    // Predicated region
    $region38: #{tpu_custom_call.1} parent=1 // pred_check
      _
    $region39: #{tpu_custom_call.1} parent=1 // pred_check_branch
      %76 = sbr.rel (0) target = $region41
    $region40: #{tpu_custom_call.1} parent=1 // pred_region
      _
    $region41: #{tpu_custom_call.1} parent=1 // pred_fallthru
      _
    // Predicated region
    $region42: #{tpu_custom_call.1} parent=1 // pred_check
      _
    $region43: #{tpu_custom_call.1} parent=1 // pred_check_branch
      %78 = sbr.rel (0) target = $region45
    $region44: #{tpu_custom_call.1} parent=1 // pred_region
      _
    $region45: #{tpu_custom_call.1} parent=1 // pred_fallthru
      _
    // Predicated region
    $region46: #{tpu_custom_call.1} parent=1 // pred_check
      _
    $region47: #{tpu_custom_call.1} parent=1 // pred_check_branch
      %80 = sbr.rel (0) target = $region49
    $region48: #{tpu_custom_call.1} parent=1 // pred_region
      %82 = vsyncadd [#allocation10], 0
      %s83 = sshll.u32 %s11, 4
      %s84 = int_to_ptr.hbm [resolvable:$true] %s83
      %s85 = sshll.u32 [#allocation9], 4
      %s86 = int_to_ptr.vmem [resolvable:$true] %s85
      %91 = dma.hbm_to_vmem [thread:$0]  %s84, 2048, %s86, [#allocation10], 64, 64, 4
    $region49: #{tpu_custom_call.1} parent=1 // pred_fallthru
      _
    // Predicated region
    $region50: #{tpu_custom_call.1} parent=1 // pred_check
      _
    $region51: #{tpu_custom_call.1} parent=1 // pred_check_branch
      %93 = sbr.rel (0) target = $region53
    $region52: #{tpu_custom_call.1} parent=1 // pred_region
      _
    $region53: #{tpu_custom_call.1} parent=1 // pred_fallthru
      _
    // Predicated region
    $region54: #{tpu_custom_call.1} parent=1 // pred_check
      _
    $region55: #{tpu_custom_call.1} parent=1 // pred_check_branch
      %95 = sbr.rel (0) target = $region57
    $region56: #{tpu_custom_call.1} parent=1 // pred_region
      %97 = vsyncadd [#allocation10], 0
      %s98 = sshll.u32 %s13, 4
      %s99 = int_to_ptr.hbm [resolvable:$true] %s98
      %s100 = sshll.u32 [#allocation11], 4
      %s101 = int_to_ptr.vmem [resolvable:$true] %s100
      %106 = dma.hbm_to_vmem [thread:$0]  %s99, 1024, %s101, [#allocation10], 64, 64, 4
    $region57: #{tpu_custom_call.1} parent=1 // pred_fallthru
      _
    // Predicated region
    $region58: #{tpu_custom_call.1} parent=1 // pred_check
      _
    $region59: #{tpu_custom_call.1} parent=1 // pred_check_branch
      %108 = sbr.rel (0) target = $region61
    $region60: #{tpu_custom_call.1} parent=1 // pred_region
      _
    $region61: #{tpu_custom_call.1} parent=1 // pred_fallthru
      _
    // Predicated region
    $region62: #{tpu_custom_call.1} parent=1 // pred_check
      _
    $region63: #{tpu_custom_call.1} parent=1 // pred_check_branch
      %110 = sbr.rel (0) target = $region65
    $region64: #{tpu_custom_call.1} parent=1 // pred_region
      %112 = dma.done [#allocation4], 1024
    $region65: #{tpu_custom_call.1} parent=1 // pred_fallthru
      _
    // Predicated region
    $region66: #{tpu_custom_call.1} parent=1 // pred_check
      _
    $region67: #{tpu_custom_call.1} parent=1 // pred_check_branch
      %114 = sbr.rel (0) target = $region69
    $region68: #{tpu_custom_call.1} parent=1 // pred_region
      %116 = dma.done [#allocation7], 2048
    $region69: #{tpu_custom_call.1} parent=1 // pred_fallthru
      _
    // Predicated region
    $region70: #{tpu_custom_call.1} parent=1 // pred_check
      _
    $region71: #{tpu_custom_call.1} parent=1 // pred_check_branch
      %118 = sbr.rel (0) target = $region73
    $region72: #{tpu_custom_call.1} parent=1 // pred_region
      %120 = dma.done [#allocation7], 4096
    $region73: #{tpu_custom_call.1} parent=1 // pred_fallthru
      _
    // Predicated region
    $region74: #{tpu_custom_call.1} parent=1 // pred_check
      _
    $region75: #{tpu_custom_call.1} parent=1 // pred_check_branch
      %122 = sbr.rel (0) target = $region77
    $region76: #{tpu_custom_call.1} parent=1 // pred_region
      %124 = dma.done [#allocation10], 2048
    $region77: #{tpu_custom_call.1} parent=1 // pred_fallthru
      _
    // Predicated region
    $region78: #{tpu_custom_call.1} parent=1 // pred_check
      _
    $region79: #{tpu_custom_call.1} parent=1 // pred_check_branch
      %126 = sbr.rel (0) target = $region81
    $region80: #{tpu_custom_call.1} parent=1 // pred_region
      %128 = dma.done [#allocation10], 1024
    $region81: #{tpu_custom_call.1} parent=1 // pred_fallthru
      _
    %v130 = vld [vmem:[%s0] sm:$0xf]
    %v131 = vld [vmem:[%s0 + $0x4] sm:$0xf]
    %v132 = vld [vmem:[%s0 + $0x8] sm:$0xf]
    %v133 = vld [vmem:[%s0 + $0xc] sm:$0xf]
    %v134 = vunpack.c.l.bf16 %v130
    %v135 = vunpack.c.l.bf16 %v131
    %v136 = vunpack.c.l.bf16 %v132
    %v137 = vunpack.c.l.bf16 %v133
    %v138 = vld [vmem:[%s2] sm:$0x3]
    %v139 = vunpack.c.l.bf16 %v138
    %141 = vset.pattern.permute.xlu0 0
    %142 = vperm.xlu0 %141, %v134
    %v143 = vpop.permute.xlu0 %142
    %146 = vset.pattern.permute.xlu0 0
    %147 = vperm.xlu0 %146, %v135
    %v148 = vpop.permute.xlu0 %147
    %151 = vset.pattern.permute.xlu0 0
    %152 = vperm.xlu0 %151, %v136
    %v153 = vpop.permute.xlu0 %152
    %156 = vset.pattern.permute.xlu0 0
    %157 = vperm.xlu0 %156, %v137
    %v158 = vpop.permute.xlu0 %157
    %v160 = vperm.slane %v139, 0
    %v161 = vmul.f32 %v143, %v160
    %v162 = vmul.f32 %v148, %v160
    %v163 = vmul.f32 %v153, %v160
    %v164 = vmul.f32 %v158, %v160
    %165 = vset.pattern.permute.xlu0 1
    %166 = vperm.xlu0 %165, %v134
    %v167 = vpop.permute.xlu0 %166
    %169 = vset.pattern.permute.xlu0 1
    %170 = vperm.xlu0 %169, %v135
    %v171 = vpop.permute.xlu0 %170
    %173 = vset.pattern.permute.xlu0 1
    %174 = vperm.xlu0 %173, %v136
    %v175 = vpop.permute.xlu0 %174
    %177 = vset.pattern.permute.xlu0 1
    %178 = vperm.xlu0 %177, %v137
    %v179 = vpop.permute.xlu0 %178
    %v181 = vperm.slane %v139, 1
    %v182 = vmul.f32 %v167, %v181
    %v183 = vmul.f32 %v171, %v181
    %v184 = vmul.f32 %v175, %v181
    %v185 = vmul.f32 %v179, %v181
    %v186 = vadd.f32 %v161, %v182
    %v187 = vadd.f32 %v162, %v183
    %v188 = vadd.f32 %v163, %v184
    %v189 = vadd.f32 %v164, %v185
    %190 = vset.pattern.permute.xlu0 2
    %191 = vperm.xlu0 %190, %v134
    %v192 = vpop.permute.xlu0 %191
    %194 = vset.pattern.permute.xlu0 2
    %195 = vperm.xlu0 %194, %v135
    %v196 = vpop.permute.xlu0 %195
    %198 = vset.pattern.permute.xlu0 2
    %199 = vperm.xlu0 %198, %v136
    %v200 = vpop.permute.xlu0 %199
    %202 = vset.pattern.permute.xlu0 2
    %203 = vperm.xlu0 %202, %v137
    %v204 = vpop.permute.xlu0 %203
    %v206 = vperm.slane %v139, 2
    %v207 = vmul.f32 %v192, %v206
    %v208 = vmul.f32 %v196, %v206
    %v209 = vmul.f32 %v200, %v206
    %v210 = vmul.f32 %v204, %v206
    %v211 = vadd.f32 %v186, %v207
    %v212 = vadd.f32 %v187, %v208
    %v213 = vadd.f32 %v188, %v209
    %v214 = vadd.f32 %v189, %v210
    %v215 = vld [vmem:[%s3] sm:$0x1]
    %v217 = vperm.slane %v215, 0
    %v219 = vadd.f32 %v211, %v217
    %v220 = vadd.f32 %v212, %v217
    %v221 = vadd.f32 %v213, %v217
    %v222 = vadd.f32 %v214, %v217
    %v223 = vmax.f32 %v219, 0.0
    %v224 = vmax.f32 %v220, 0.0
    %v225 = vmax.f32 %v221, 0.0
    %v226 = vmax.f32 %v222, 0.0
    %v227 = vpack.c.bf16 %v224, %v223
    %v228 = vpack.c.bf16 %v226, %v225
    %v229 = vld [vmem:[#allocation3] sm:$0xf]
    %v230 = vld [vmem:[#allocation3 + $0x4] sm:$0xf]
    %v231 = vld [vmem:[#allocation3 + $0x8] sm:$0xf]
    %v232 = vld [vmem:[#allocation3 + $0xc] sm:$0xf]
    %v233 = vld [vmem:[#allocation3 + $0x10] sm:$0xf]
    %v234 = vld [vmem:[#allocation3 + $0x14] sm:$0xf]
    %v235 = vld [vmem:[#allocation3 + $0x18] sm:$0xf]
    %v236 = vld [vmem:[#allocation3 + $0x1c] sm:$0xf]
    %v237 = vld [vmem:[#allocation3 + $0x20] sm:$0xf]
    %v238 = vld [vmem:[#allocation3 + $0x24] sm:$0xf]
    %v239 = vld [vmem:[#allocation3 + $0x28] sm:$0xf]
    %v240 = vld [vmem:[#allocation3 + $0x2c] sm:$0xf]
    %v241 = vld [vmem:[#allocation3 + $0x30] sm:$0xf]
    %v242 = vld [vmem:[#allocation3 + $0x34] sm:$0xf]
    %v243 = vld [vmem:[#allocation3 + $0x38] sm:$0xf]
    %v244 = vld [vmem:[#allocation3 + $0x3c] sm:$0xf]
    %v245 = vld [vmem:[%s5] sm:$0x1]
    %v247 = vperm.slane %v245, 0
    %v265 = vunpack.c.l.b16 %v229
    %v266 = vunpack.c.l.b16 %v230
    %v267 = vunpack.c.l.b16 %v231
    %v268 = vunpack.c.l.b16 %v232
    %v269 = vunpack.c.l.b16 %v233
    %v270 = vunpack.c.l.b16 %v234
    %v271 = vunpack.c.l.b16 %v235
    %v272 = vunpack.c.l.b16 %v236
    %v273 = vunpack.c.l.b16 %v237
    %v274 = vunpack.c.l.b16 %v238
    %v275 = vunpack.c.l.b16 %v239
    %v276 = vunpack.c.l.b16 %v240
    %v277 = vunpack.c.l.b16 %v241
    %v278 = vunpack.c.l.b16 %v242
    %v279 = vunpack.c.l.b16 %v243
    %v280 = vunpack.c.l.b16 %v244
    %v281 = vpack.c.b16 %v266, %v265
    %v282 = vpack.c.b16 %v268, %v267
    %v283 = vpack.c.b16 %v270, %v269
    %v284 = vpack.c.b16 %v272, %v271
    %v285 = vpack.c.b16 %v274, %v273
    %v286 = vpack.c.b16 %v276, %v275
    %v287 = vpack.c.b16 %v278, %v277
    %v288 = vpack.c.b16 %v280, %v279
    %297 = vmatpush.bf16.msra.mxu0 %v288
    %298 = vmatpush.bf16.msra.mxu0 %v287
    %299 = vmatpush.bf16.msra.mxu0 %v286
    %300 = vmatpush.bf16.msra.mxu0 %v285
    %301 = vmatpush.bf16.msra.mxu0 %v284
    %302 = vmatpush.bf16.msra.mxu0 %v283
    %303 = vmatpush.bf16.msra.mxu0 %v282
    %304 = vmatpush.bf16.msra.mxu0 %v281
    %305 = vmatmul.bf16.gmra.mxu0 %v227
    %v306 = vpop.f32.mrf.mxu0
    %v307 = vadd.f32 %v247, %v306
    %v308 = vpop.f32.mrf.mxu0
    %v309 = vadd.f32 %v247, %v308
    %310 = vmatmul.bf16.gmra.mxu0 %v228
    %v311 = vpop.f32.mrf.mxu0
    %v312 = vadd.f32 %v247, %v311
    %v313 = vpop.f32.mrf.mxu0
    %v314 = vadd.f32 %v247, %v313
    %315 = vdwg.mxu0
    %v316 = vmax.f32 %v307, 0.0
    %v317 = vmax.f32 %v309, 0.0
    %v318 = vmax.f32 %v312, 0.0
    %v319 = vmax.f32 %v314, 0.0
    %v320 = vpack.c.bf16 %v317, %v316
    %v321 = vpack.c.bf16 %v319, %v318
    %v322 = vld [vmem:[#allocation6] sm:$0xff]
    %v323 = vld [vmem:[#allocation6 + $0x8] sm:$0xff]
    %v324 = vld [vmem:[#allocation6 + $0x10] sm:$0xff]
    %v325 = vld [vmem:[#allocation6 + $0x18] sm:$0xff]
    %v326 = vld [vmem:[#allocation6 + $0x20] sm:$0xff]
    %v327 = vld [vmem:[#allocation6 + $0x28] sm:$0xff]
    %v328 = vld [vmem:[#allocation6 + $0x30] sm:$0xff]
    %v329 = vld [vmem:[#allocation6 + $0x38] sm:$0xff]
    %v330 = vld [vmem:[#allocation6 + $0x40] sm:$0xff]
    %v331 = vld [vmem:[#allocation6 + $0x48] sm:$0xff]
    %v332 = vld [vmem:[#allocation6 + $0x50] sm:$0xff]
    %v333 = vld [vmem:[#allocation6 + $0x58] sm:$0xff]
    %v334 = vld [vmem:[#allocation6 + $0x60] sm:$0xff]
    %v335 = vld [vmem:[#allocation6 + $0x68] sm:$0xff]
    %v336 = vld [vmem:[#allocation6 + $0x70] sm:$0xff]
    %v337 = vld [vmem:[#allocation6 + $0x78] sm:$0xff]
    %v338 = vld [vmem:[%s7] sm:$0x3]
    %v340 = vperm.slane %v338, 0
    %v341 = vperm.slane %v338, 1
    %v360 = vunpack.c.l.b16 %v322
    %v361 = vunpack.c.h.b16 %v322
    %v362 = vunpack.c.l.b16 %v323
    %v363 = vunpack.c.h.b16 %v323
    %v364 = vunpack.c.l.b16 %v324
    %v365 = vunpack.c.h.b16 %v324
    %v366 = vunpack.c.l.b16 %v325
    %v367 = vunpack.c.h.b16 %v325
    %v368 = vunpack.c.l.b16 %v326
    %v369 = vunpack.c.h.b16 %v326
    %v370 = vunpack.c.l.b16 %v327
    %v371 = vunpack.c.h.b16 %v327
    %v372 = vunpack.c.l.b16 %v328
    %v373 = vunpack.c.h.b16 %v328
    %v374 = vunpack.c.l.b16 %v329
    %v375 = vunpack.c.h.b16 %v329
    %v376 = vunpack.c.l.b16 %v330
    %v377 = vunpack.c.h.b16 %v330
    %v378 = vunpack.c.l.b16 %v331
    %v379 = vunpack.c.h.b16 %v331
    %v380 = vunpack.c.l.b16 %v332
    %v381 = vunpack.c.h.b16 %v332
    %v382 = vunpack.c.l.b16 %v333
    %v383 = vunpack.c.h.b16 %v333
    %v384 = vunpack.c.l.b16 %v334
    %v385 = vunpack.c.h.b16 %v334
    %v386 = vunpack.c.l.b16 %v335
    %v387 = vunpack.c.h.b16 %v335
    %v388 = vunpack.c.l.b16 %v336
    %v389 = vunpack.c.h.b16 %v336
    %v390 = vunpack.c.l.b16 %v337
    %v391 = vunpack.c.h.b16 %v337
    %v392 = vpack.c.b16 %v362, %v360
    %v393 = vpack.c.b16 %v363, %v361
    %v394 = vpack.c.b16 %v366, %v364
    %v395 = vpack.c.b16 %v367, %v365
    %v396 = vpack.c.b16 %v370, %v368
    %v397 = vpack.c.b16 %v371, %v369
    %v398 = vpack.c.b16 %v374, %v372
    %v399 = vpack.c.b16 %v375, %v373
    %v400 = vpack.c.b16 %v378, %v376
    %v401 = vpack.c.b16 %v379, %v377
    %v402 = vpack.c.b16 %v382, %v380
    %v403 = vpack.c.b16 %v383, %v381
    %v404 = vpack.c.b16 %v386, %v384
    %v405 = vpack.c.b16 %v387, %v385
    %v406 = vpack.c.b16 %v390, %v388
    %v407 = vpack.c.b16 %v391, %v389
    %424 = vmatpush.bf16.msra.mxu0 %v406
    %425 = vmatpush.bf16.msra.mxu0 %v404
    %426 = vmatpush.bf16.msra.mxu0 %v402
    %427 = vmatpush.bf16.msra.mxu0 %v400
    %428 = vmatpush.bf16.msra.mxu0 %v398
    %429 = vmatpush.bf16.msra.mxu0 %v396
    %430 = vmatpush.bf16.msra.mxu0 %v394
    %431 = vmatpush.bf16.msra.mxu0 %v392
    %432 = vmatmul.bf16.gmra.mxu0 %v320
    %v433 = vpop.f32.mrf.mxu0
    %v434 = vadd.f32 %v340, %v433
    %v435 = vpop.f32.mrf.mxu0
    %v436 = vadd.f32 %v340, %v435
    %437 = vmatmul.bf16.gmra.mxu0 %v321
    %v438 = vpop.f32.mrf.mxu0
    %v439 = vadd.f32 %v340, %v438
    %v440 = vpop.f32.mrf.mxu0
    %v441 = vadd.f32 %v340, %v440
    %442 = vdwg.mxu0
    %443 = vmatpush.bf16.msra.mxu0 %v407
    %444 = vmatpush.bf16.msra.mxu0 %v405
    %445 = vmatpush.bf16.msra.mxu0 %v403
    %446 = vmatpush.bf16.msra.mxu0 %v401
    %447 = vmatpush.bf16.msra.mxu0 %v399
    %448 = vmatpush.bf16.msra.mxu0 %v397
    %449 = vmatpush.bf16.msra.mxu0 %v395
    %450 = vmatpush.bf16.msra.mxu0 %v393
    %451 = vmatmul.bf16.gmra.mxu0 %v320
    %v452 = vpop.f32.mrf.mxu0
    %v453 = vadd.f32 %v341, %v452
    %v454 = vpop.f32.mrf.mxu0
    %v455 = vadd.f32 %v341, %v454
    %456 = vmatmul.bf16.gmra.mxu0 %v321
    %v457 = vpop.f32.mrf.mxu0
    %v458 = vadd.f32 %v341, %v457
    %v459 = vpop.f32.mrf.mxu0
    %v460 = vadd.f32 %v341, %v459
    %461 = vdwg.mxu0
    %v462 = vmax.f32 %v434, 0.0
    %v463 = vmax.f32 %v453, 0.0
    %v464 = vmax.f32 %v436, 0.0
    %v465 = vmax.f32 %v455, 0.0
    %v466 = vmax.f32 %v439, 0.0
    %v467 = vmax.f32 %v458, 0.0
    %v468 = vmax.f32 %v441, 0.0
    %v469 = vmax.f32 %v460, 0.0
    %v470 = vmax.f32 %v462, %v464
    %v471 = vrot.slane %v470, 4
    %v472 = vmax.f32 %v470, %v471
    %v473 = vrot.slane %v472, 2
    %v474 = vmax.f32 %v472, %v473
    %v475 = vrot.slane %v474, 1
    %v476 = vmax.f32 %v474, %v475
    %v477 = vmax.f32 %v463, %v465
    %v478 = vrot.slane %v477, 4
    %v479 = vmax.f32 %v477, %v478
    %v480 = vrot.slane %v479, 2
    %v481 = vmax.f32 %v479, %v480
    %v482 = vrot.slane %v481, 1
    %v483 = vmax.f32 %v481, %v482
    %v484 = vmax.f32 %v466, %v468
    %v485 = vrot.slane %v484, 4
    %v486 = vmax.f32 %v484, %v485
    %v487 = vrot.slane %v486, 2
    %v488 = vmax.f32 %v486, %v487
    %v489 = vrot.slane %v488, 1
    %v490 = vmax.f32 %v488, %v489
    %v491 = vmax.f32 %v467, %v469
    %v492 = vrot.slane %v491, 4
    %v493 = vmax.f32 %v491, %v492
    %v494 = vrot.slane %v493, 2
    %v495 = vmax.f32 %v493, %v494
    %v496 = vrot.slane %v495, 1
    %v497 = vmax.f32 %v495, %v496
    %p498 = scmp.eq.s32.totalorder 0, 0
    // Predicated region
    $region82: #{tpu_custom_call.1} parent=1 // pred_check
      %p499 = pneg %p498
    $region83: #{tpu_custom_call.1} parent=1 // pred_check_branch
      %501 = sbr.rel (%p499) target = $region85
    $region84: #{tpu_custom_call.1} parent=1 // pred_region
      %502 = vst [vmem:[#allocation2] sm:$0xf] -inf
    $region85: #{tpu_custom_call.1} parent=1 // pred_fallthru
      _
    %v503 = vld [vmem:[#allocation2] sm:$0xf]
    %v508 = vrot.slane %v483, 6
    %v509 = vrot.slane %v497, 6
    %vm510 = vcmask 1041408
    %v511 = vsel %vm510, %v476, %v508
    %v512 = vsel %vm510, %v490, %v509
    %vm513 = vcmask 1044484
    %v514 = vsel %vm513, %v511, %v511
    %vm515 = vcmask 1046534
    %v516 = vsel %vm515, %v511, %v514
    %v517 = vrot.slane %v512, 7
    %vm518 = vcmask 1041409
    %v519 = vsel %vm518, %v517, %v516
    %vm520 = vcmask 1043459
    %v521 = vsel %vm520, %v517, %v519
    %vm522 = vcmask 1045509
    %v523 = vsel %vm522, %v517, %v521
    %vm524 = vcmask 1047559
    %v525 = vsel %vm524, %v517, %v523
    %v527 = vmax.f32 %v503, %v525
    %528 = vst [vmem:[#allocation2] sm:$0xf] %v527
    // Predicated region
    $region86: #{tpu_custom_call.1} parent=1 // pred_check
      %p529 = pneg %p498
    $region87: #{tpu_custom_call.1} parent=1 // pred_check_branch
      %531 = sbr.rel (%p529) target = $region89
    $region88: #{tpu_custom_call.1} parent=1 // pred_region
      %v532 = vld [vmem:[#allocation2] sm:$0xf]
      %534 = vst [vmem:[#allocation1] ss:$4 sm:$0xff] %v532
      %v535 = vld.sshfl [vmem:[#allocation1] sm:$0xff pattern:$0x73625140]
      %v536 = vld.sshfl [vmem:[#allocation1 + $0x8] sm:$0xff pattern:$0x73625140]
      %v539 = vpack.c.bf16 %v535, %v535
      %v540 = vpack.c.bf16 %v536, %v536
      %v541 = vld [vmem:[#allocation8] sm:$0xff]
      %v542 = vld [vmem:[#allocation8 + $0x8] sm:$0xff]
      %v543 = vld [vmem:[#allocation8 + $0x10] sm:$0xff]
      %v544 = vld [vmem:[#allocation8 + $0x18] sm:$0xff]
      %v545 = vld [vmem:[#allocation8 + $0x20] sm:$0xff]
      %v546 = vld [vmem:[#allocation8 + $0x28] sm:$0xff]
      %v547 = vld [vmem:[#allocation8 + $0x30] sm:$0xff]
      %v548 = vld [vmem:[#allocation8 + $0x38] sm:$0xff]
      %v549 = vld [vmem:[#allocation8 + $0x40] sm:$0xff]
      %v550 = vld [vmem:[#allocation8 + $0x48] sm:$0xff]
      %v551 = vld [vmem:[#allocation8 + $0x50] sm:$0xff]
      %v552 = vld [vmem:[#allocation8 + $0x58] sm:$0xff]
      %v553 = vld [vmem:[#allocation8 + $0x60] sm:$0xff]
      %v554 = vld [vmem:[#allocation8 + $0x68] sm:$0xff]
      %v555 = vld [vmem:[#allocation8 + $0x70] sm:$0xff]
      %v556 = vld [vmem:[#allocation8 + $0x78] sm:$0xff]
      %v557 = vld [vmem:[#allocation8 + $0x80] sm:$0xff]
      %v558 = vld [vmem:[#allocation8 + $0x88] sm:$0xff]
      %v559 = vld [vmem:[#allocation8 + $0x90] sm:$0xff]
      %v560 = vld [vmem:[#allocation8 + $0x98] sm:$0xff]
      %v561 = vld [vmem:[#allocation8 + $0xa0] sm:$0xff]
      %v562 = vld [vmem:[#allocation8 + $0xa8] sm:$0xff]
      %v563 = vld [vmem:[#allocation8 + $0xb0] sm:$0xff]
      %v564 = vld [vmem:[#allocation8 + $0xb8] sm:$0xff]
      %v565 = vld [vmem:[#allocation8 + $0xc0] sm:$0xff]
      %v566 = vld [vmem:[#allocation8 + $0xc8] sm:$0xff]
      %v567 = vld [vmem:[#allocation8 + $0xd0] sm:$0xff]
      %v568 = vld [vmem:[#allocation8 + $0xd8] sm:$0xff]
      %v569 = vld [vmem:[#allocation8 + $0xe0] sm:$0xff]
      %v570 = vld [vmem:[#allocation8 + $0xe8] sm:$0xff]
      %v571 = vld [vmem:[#allocation8 + $0xf0] sm:$0xff]
      %v572 = vld [vmem:[#allocation8 + $0xf8] sm:$0xff]
      %v573 = vld [vmem:[%s1] sm:$0x1]
      %v574 = vld [vmem:[%s9] sm:$0xff]
      %v576 = vunpack.c.l.b16 %v574
      %v577 = vunpack.c.h.b16 %v574
      %v578 = vpack.c.b16 %v576, %v576
      %v579 = vpack.c.b16 %v577, %v577
      %vm580 = vcmask 64512
      %v582 = vsel %vm580, %v573, 0
      %vm584 = vcmask 1043456
      %v586 = vsel %vm584, %v578, 0
      %v589 = vsel %vm584, %v579, 0
      %591 = vmatpush.bf16.msra.mxu0 0
      %592 = vmatpush.bf16.msra.mxu0 0
      %593 = vmatpush.bf16.msra.mxu0 0
      %594 = vmatpush.bf16.msra.mxu0 0
      %595 = vmatpush.bf16.msra.mxu0 0
      %596 = vmatpush.bf16.msra.mxu0 0
      %597 = vmatpush.bf16.msra.mxu0 0
      %598 = vmatpush.bf16.msra.mxu0 %v586
      %599 = vmatmul.bf16.gmra.mxu0 %v582
      %v600 = vpop.f32.mrf.mxu0
      %v601 = vadd.f32 0.0, %v600
      %v602 = vpop.f32.mrf.mxu0
      %603 = vdwg.mxu0
      %604 = vmatpush.bf16.msra.mxu0 0
      %605 = vmatpush.bf16.msra.mxu0 0
      %606 = vmatpush.bf16.msra.mxu0 0
      %607 = vmatpush.bf16.msra.mxu0 0
      %608 = vmatpush.bf16.msra.mxu0 0
      %609 = vmatpush.bf16.msra.mxu0 0
      %610 = vmatpush.bf16.msra.mxu0 0
      %611 = vmatpush.bf16.msra.mxu0 %v589
      %612 = vmatmul.bf16.gmra.mxu0 %v582
      %v613 = vpop.f32.mrf.mxu0
      %v614 = vadd.f32 0.0, %v613
      %v615 = vpop.f32.mrf.mxu0
      %616 = vdwg.mxu0
      %v649 = vunpack.c.l.b16 %v541
      %v650 = vunpack.c.h.b16 %v541
      %v651 = vunpack.c.l.b16 %v542
      %v652 = vunpack.c.h.b16 %v542
      %v653 = vunpack.c.l.b16 %v543
      %v654 = vunpack.c.h.b16 %v543
      %v655 = vunpack.c.l.b16 %v544
      %v656 = vunpack.c.h.b16 %v544
      %v657 = vunpack.c.l.b16 %v545
      %v658 = vunpack.c.h.b16 %v545
      %v659 = vunpack.c.l.b16 %v546
      %v660 = vunpack.c.h.b16 %v546
      %v661 = vunpack.c.l.b16 %v547
      %v662 = vunpack.c.h.b16 %v547
      %v663 = vunpack.c.l.b16 %v548
      %v664 = vunpack.c.h.b16 %v548
      %v665 = vunpack.c.l.b16 %v549
      %v666 = vunpack.c.h.b16 %v549
      %v667 = vunpack.c.l.b16 %v550
      %v668 = vunpack.c.h.b16 %v550
      %v669 = vunpack.c.l.b16 %v551
      %v670 = vunpack.c.h.b16 %v551
      %v671 = vunpack.c.l.b16 %v552
      %v672 = vunpack.c.h.b16 %v552
      %v673 = vunpack.c.l.b16 %v553
      %v674 = vunpack.c.h.b16 %v553
      %v675 = vunpack.c.l.b16 %v554
      %v676 = vunpack.c.h.b16 %v554
      %v677 = vunpack.c.l.b16 %v555
      %v678 = vunpack.c.h.b16 %v555
      %v679 = vunpack.c.l.b16 %v556
      %v680 = vunpack.c.h.b16 %v556
      %v681 = vunpack.c.l.b16 %v557
      %v682 = vunpack.c.h.b16 %v557
      %v683 = vunpack.c.l.b16 %v558
      %v684 = vunpack.c.h.b16 %v558
      %v685 = vunpack.c.l.b16 %v559
      %v686 = vunpack.c.h.b16 %v559
      %v687 = vunpack.c.l.b16 %v560
      %v688 = vunpack.c.h.b16 %v560
      %v689 = vunpack.c.l.b16 %v561
      %v690 = vunpack.c.h.b16 %v561
      %v691 = vunpack.c.l.b16 %v562
      %v692 = vunpack.c.h.b16 %v562
      %v693 = vunpack.c.l.b16 %v563
      %v694 = vunpack.c.h.b16 %v563
      %v695 = vunpack.c.l.b16 %v564
      %v696 = vunpack.c.h.b16 %v564
      %v697 = vunpack.c.l.b16 %v565
      %v698 = vunpack.c.h.b16 %v565
      %v699 = vunpack.c.l.b16 %v566
      %v700 = vunpack.c.h.b16 %v566
      %v701 = vunpack.c.l.b16 %v567
      %v702 = vunpack.c.h.b16 %v567
      %v703 = vunpack.c.l.b16 %v568
      %v704 = vunpack.c.h.b16 %v568
      %v705 = vunpack.c.l.b16 %v569
      %v706 = vunpack.c.h.b16 %v569
      %v707 = vunpack.c.l.b16 %v570
      %v708 = vunpack.c.h.b16 %v570
      %v709 = vunpack.c.l.b16 %v571
      %v710 = vunpack.c.h.b16 %v571
      %v711 = vunpack.c.l.b16 %v572
      %v712 = vunpack.c.h.b16 %v572
      %v713 = vpack.c.b16 %v651, %v649
      %v714 = vpack.c.b16 %v652, %v650
      %v715 = vpack.c.b16 %v655, %v653
      %v716 = vpack.c.b16 %v656, %v654
      %v717 = vpack.c.b16 %v659, %v657
      %v718 = vpack.c.b16 %v660, %v658
      %v719 = vpack.c.b16 %v663, %v661
      %v720 = vpack.c.b16 %v664, %v662
      %v721 = vpack.c.b16 %v667, %v665
      %v722 = vpack.c.b16 %v668, %v666
      %v723 = vpack.c.b16 %v671, %v669
      %v724 = vpack.c.b16 %v672, %v670
      %v725 = vpack.c.b16 %v675, %v673
      %v726 = vpack.c.b16 %v676, %v674
      %v727 = vpack.c.b16 %v679, %v677
      %v728 = vpack.c.b16 %v680, %v678
      %v729 = vpack.c.b16 %v683, %v681
      %v730 = vpack.c.b16 %v684, %v682
      %v731 = vpack.c.b16 %v687, %v685
      %v732 = vpack.c.b16 %v688, %v686
      %v733 = vpack.c.b16 %v691, %v689
      %v734 = vpack.c.b16 %v692, %v690
      %v735 = vpack.c.b16 %v695, %v693
      %v736 = vpack.c.b16 %v696, %v694
      %v737 = vpack.c.b16 %v699, %v697
      %v738 = vpack.c.b16 %v700, %v698
      %v739 = vpack.c.b16 %v703, %v701
      %v740 = vpack.c.b16 %v704, %v702
      %v741 = vpack.c.b16 %v707, %v705
      %v742 = vpack.c.b16 %v708, %v706
      %v743 = vpack.c.b16 %v711, %v709
      %v744 = vpack.c.b16 %v712, %v710
      %777 = vmatpush.bf16.msra.mxu0 %v727
      %778 = vmatpush.bf16.msra.mxu0 %v725
      %779 = vmatpush.bf16.msra.mxu0 %v723
      %780 = vmatpush.bf16.msra.mxu0 %v721
      %781 = vmatpush.bf16.msra.mxu0 %v719
      %782 = vmatpush.bf16.msra.mxu0 %v717
      %783 = vmatpush.bf16.msra.mxu0 %v715
      %784 = vmatpush.bf16.msra.mxu0 %v713
      %785 = vmatmul.bf16.gmra.mxu0 %v539
      %v786 = vpop.f32.mrf.mxu0
      %v787 = vadd.f32 %v601, %v786
      %v788 = vpop.f32.mrf.mxu0
      %789 = vdwg.mxu0
      %790 = vmatpush.bf16.msra.mxu0 %v743
      %791 = vmatpush.bf16.msra.mxu0 %v741
      %792 = vmatpush.bf16.msra.mxu0 %v739
      %793 = vmatpush.bf16.msra.mxu0 %v737
      %794 = vmatpush.bf16.msra.mxu0 %v735
      %795 = vmatpush.bf16.msra.mxu0 %v733
      %796 = vmatpush.bf16.msra.mxu0 %v731
      %797 = vmatpush.bf16.msra.mxu0 %v729
      %798 = vmatmul.bf16.gmra.mxu0 %v540
      %v799 = vpop.f32.mrf.mxu0
      %v800 = vadd.f32 %v787, %v799
      %v801 = vpop.f32.mrf.mxu0
      %802 = vdwg.mxu0
      %803 = vmatpush.bf16.msra.mxu0 %v728
      %804 = vmatpush.bf16.msra.mxu0 %v726
      %805 = vmatpush.bf16.msra.mxu0 %v724
      %806 = vmatpush.bf16.msra.mxu0 %v722
      %807 = vmatpush.bf16.msra.mxu0 %v720
      %808 = vmatpush.bf16.msra.mxu0 %v718
      %809 = vmatpush.bf16.msra.mxu0 %v716
      %810 = vmatpush.bf16.msra.mxu0 %v714
      %811 = vmatmul.bf16.gmra.mxu0 %v539
      %v812 = vpop.f32.mrf.mxu0
      %v813 = vadd.f32 %v614, %v812
      %v814 = vpop.f32.mrf.mxu0
      %815 = vdwg.mxu0
      %816 = vmatpush.bf16.msra.mxu0 %v744
      %817 = vmatpush.bf16.msra.mxu0 %v742
      %818 = vmatpush.bf16.msra.mxu0 %v740
      %819 = vmatpush.bf16.msra.mxu0 %v738
      %820 = vmatpush.bf16.msra.mxu0 %v736
      %821 = vmatpush.bf16.msra.mxu0 %v734
      %822 = vmatpush.bf16.msra.mxu0 %v732
      %823 = vmatpush.bf16.msra.mxu0 %v730
      %824 = vmatmul.bf16.gmra.mxu0 %v540
      %v825 = vpop.f32.mrf.mxu0
      %v826 = vadd.f32 %v813, %v825
      %v827 = vpop.f32.mrf.mxu0
      %828 = vdwg.mxu0
      %v829 = vld [vmem:[%s10] sm:$0x3]
      %v831 = vperm.slane %v829, 0
      %v832 = vperm.slane %v829, 1
      %v835 = vadd.f32 %v800, %v831
      %v836 = vadd.f32 %v826, %v832
      %v837 = vmax.f32 %v835, 0.0
      %v838 = vmax.f32 %v836, 0.0
      %v839 = vpack.c.bf16 %v837, %v837
      %v840 = vpack.c.bf16 %v838, %v838
      %v841 = vld [vmem:[#allocation9] sm:$0xf]
      %v842 = vld [vmem:[#allocation9 + $0x4] sm:$0xf]
      %v843 = vld [vmem:[#allocation9 + $0x8] sm:$0xf]
      %v844 = vld [vmem:[#allocation9 + $0xc] sm:$0xf]
      %v845 = vld [vmem:[#allocation9 + $0x10] sm:$0xf]
      %v846 = vld [vmem:[#allocation9 + $0x14] sm:$0xf]
      %v847 = vld [vmem:[#allocation9 + $0x18] sm:$0xf]
      %v848 = vld [vmem:[#allocation9 + $0x1c] sm:$0xf]
      %v849 = vld [vmem:[#allocation9 + $0x20] sm:$0xf]
      %v850 = vld [vmem:[#allocation9 + $0x24] sm:$0xf]
      %v851 = vld [vmem:[#allocation9 + $0x28] sm:$0xf]
      %v852 = vld [vmem:[#allocation9 + $0x2c] sm:$0xf]
      %v853 = vld [vmem:[#allocation9 + $0x30] sm:$0xf]
      %v854 = vld [vmem:[#allocation9 + $0x34] sm:$0xf]
      %v855 = vld [vmem:[#allocation9 + $0x38] sm:$0xf]
      %v856 = vld [vmem:[#allocation9 + $0x3c] sm:$0xf]
      %v857 = vld [vmem:[#allocation9 + $0x40] sm:$0xf]
      %v858 = vld [vmem:[#allocation9 + $0x44] sm:$0xf]
      %v859 = vld [vmem:[#allocation9 + $0x48] sm:$0xf]
      %v860 = vld [vmem:[#allocation9 + $0x4c] sm:$0xf]
      %v861 = vld [vmem:[#allocation9 + $0x50] sm:$0xf]
      %v862 = vld [vmem:[#allocation9 + $0x54] sm:$0xf]
      %v863 = vld [vmem:[#allocation9 + $0x58] sm:$0xf]
      %v864 = vld [vmem:[#allocation9 + $0x5c] sm:$0xf]
      %v865 = vld [vmem:[#allocation9 + $0x60] sm:$0xf]
      %v866 = vld [vmem:[#allocation9 + $0x64] sm:$0xf]
      %v867 = vld [vmem:[#allocation9 + $0x68] sm:$0xf]
      %v868 = vld [vmem:[#allocation9 + $0x6c] sm:$0xf]
      %v869 = vld [vmem:[#allocation9 + $0x70] sm:$0xf]
      %v870 = vld [vmem:[#allocation9 + $0x74] sm:$0xf]
      %v871 = vld [vmem:[#allocation9 + $0x78] sm:$0xf]
      %v872 = vld [vmem:[#allocation9 + $0x7c] sm:$0xf]
      %v873 = vld [vmem:[%s12] sm:$0x1]
      %v875 = vperm.slane %v873, 0
      %v909 = vunpack.c.l.b16 %v841
      %v910 = vunpack.c.l.b16 %v842
      %v911 = vunpack.c.l.b16 %v843
      %v912 = vunpack.c.l.b16 %v844
      %v913 = vunpack.c.l.b16 %v845
      %v914 = vunpack.c.l.b16 %v846
      %v915 = vunpack.c.l.b16 %v847
      %v916 = vunpack.c.l.b16 %v848
      %v917 = vunpack.c.l.b16 %v849
      %v918 = vunpack.c.l.b16 %v850
      %v919 = vunpack.c.l.b16 %v851
      %v920 = vunpack.c.l.b16 %v852
      %v921 = vunpack.c.l.b16 %v853
      %v922 = vunpack.c.l.b16 %v854
      %v923 = vunpack.c.l.b16 %v855
      %v924 = vunpack.c.l.b16 %v856
      %v925 = vunpack.c.l.b16 %v857
      %v926 = vunpack.c.l.b16 %v858
      %v927 = vunpack.c.l.b16 %v859
      %v928 = vunpack.c.l.b16 %v860
      %v929 = vunpack.c.l.b16 %v861
      %v930 = vunpack.c.l.b16 %v862
      %v931 = vunpack.c.l.b16 %v863
      %v932 = vunpack.c.l.b16 %v864
      %v933 = vunpack.c.l.b16 %v865
      %v934 = vunpack.c.l.b16 %v866
      %v935 = vunpack.c.l.b16 %v867
      %v936 = vunpack.c.l.b16 %v868
      %v937 = vunpack.c.l.b16 %v869
      %v938 = vunpack.c.l.b16 %v870
      %v939 = vunpack.c.l.b16 %v871
      %v940 = vunpack.c.l.b16 %v872
      %v941 = vpack.c.b16 %v910, %v909
      %v942 = vpack.c.b16 %v912, %v911
      %v943 = vpack.c.b16 %v914, %v913
      %v944 = vpack.c.b16 %v916, %v915
      %v945 = vpack.c.b16 %v918, %v917
      %v946 = vpack.c.b16 %v920, %v919
      %v947 = vpack.c.b16 %v922, %v921
      %v948 = vpack.c.b16 %v924, %v923
      %v949 = vpack.c.b16 %v926, %v925
      %v950 = vpack.c.b16 %v928, %v927
      %v951 = vpack.c.b16 %v930, %v929
      %v952 = vpack.c.b16 %v932, %v931
      %v953 = vpack.c.b16 %v934, %v933
      %v954 = vpack.c.b16 %v936, %v935
      %v955 = vpack.c.b16 %v938, %v937
      %v956 = vpack.c.b16 %v940, %v939
      %973 = vmatpush.bf16.msra.mxu0 %v948
      %974 = vmatpush.bf16.msra.mxu0 %v947
      %975 = vmatpush.bf16.msra.mxu0 %v946
      %976 = vmatpush.bf16.msra.mxu0 %v945
      %977 = vmatpush.bf16.msra.mxu0 %v944
      %978 = vmatpush.bf16.msra.mxu0 %v943
      %979 = vmatpush.bf16.msra.mxu0 %v942
      %980 = vmatpush.bf16.msra.mxu0 %v941
      %981 = vmatmul.bf16.gmra.mxu0 %v839
      %v982 = vpop.f32.mrf.mxu0
      %v983 = vadd.f32 %v875, %v982
      %v984 = vpop.f32.mrf.mxu0
      %985 = vdwg.mxu0
      %986 = vmatpush.bf16.msra.mxu0 %v956
      %987 = vmatpush.bf16.msra.mxu0 %v955
      %988 = vmatpush.bf16.msra.mxu0 %v954
      %989 = vmatpush.bf16.msra.mxu0 %v953
      %990 = vmatpush.bf16.msra.mxu0 %v952
      %991 = vmatpush.bf16.msra.mxu0 %v951
      %992 = vmatpush.bf16.msra.mxu0 %v950
      %993 = vmatpush.bf16.msra.mxu0 %v949
      %994 = vmatmul.bf16.gmra.mxu0 %v840
      %v995 = vpop.f32.mrf.mxu0
      %v996 = vadd.f32 %v983, %v995
      %v997 = vpop.f32.mrf.mxu0
      %998 = vdwg.mxu0
      %v999 = vmax.f32 %v996, 0.0
      %v1000 = vpack.c.bf16 %v999, %v999
      %v1001 = vld [vmem:[#allocation11] sm:$0xf]
      %v1002 = vld [vmem:[#allocation11 + $0x4] sm:$0xf]
      %v1003 = vld [vmem:[#allocation11 + $0x8] sm:$0xf]
      %v1004 = vld [vmem:[#allocation11 + $0xc] sm:$0xf]
      %v1005 = vld [vmem:[#allocation11 + $0x10] sm:$0xf]
      %v1006 = vld [vmem:[#allocation11 + $0x14] sm:$0xf]
      %v1007 = vld [vmem:[#allocation11 + $0x18] sm:$0xf]
      %v1008 = vld [vmem:[#allocation11 + $0x1c] sm:$0xf]
      %v1009 = vld [vmem:[#allocation11 + $0x20] sm:$0xf]
      %v1010 = vld [vmem:[#allocation11 + $0x24] sm:$0xf]
      %v1011 = vld [vmem:[#allocation11 + $0x28] sm:$0xf]
      %v1012 = vld [vmem:[#allocation11 + $0x2c] sm:$0xf]
      %v1013 = vld [vmem:[#allocation11 + $0x30] sm:$0xf]
      %v1014 = vld [vmem:[#allocation11 + $0x34] sm:$0xf]
      %v1015 = vld [vmem:[#allocation11 + $0x38] sm:$0xf]
      %v1016 = vld [vmem:[#allocation11 + $0x3c] sm:$0xf]
      %v1017 = vld [vmem:[%s14] sm:$0x1]
      %v1019 = vperm.slane %v1017, 0
      %v1037 = vunpack.c.l.b16 %v1001
      %v1038 = vunpack.c.l.b16 %v1002
      %v1039 = vunpack.c.l.b16 %v1003
      %v1040 = vunpack.c.l.b16 %v1004
      %v1041 = vunpack.c.l.b16 %v1005
      %v1042 = vunpack.c.l.b16 %v1006
      %v1043 = vunpack.c.l.b16 %v1007
      %v1044 = vunpack.c.l.b16 %v1008
      %v1045 = vunpack.c.l.b16 %v1009
      %v1046 = vunpack.c.l.b16 %v1010
      %v1047 = vunpack.c.l.b16 %v1011
      %v1048 = vunpack.c.l.b16 %v1012
      %v1049 = vunpack.c.l.b16 %v1013
      %v1050 = vunpack.c.l.b16 %v1014
      %v1051 = vunpack.c.l.b16 %v1015
      %v1052 = vunpack.c.l.b16 %v1016
      %v1053 = vpack.c.b16 %v1038, %v1037
      %v1054 = vpack.c.b16 %v1040, %v1039
      %v1055 = vpack.c.b16 %v1042, %v1041
      %v1056 = vpack.c.b16 %v1044, %v1043
      %v1057 = vpack.c.b16 %v1046, %v1045
      %v1058 = vpack.c.b16 %v1048, %v1047
      %v1059 = vpack.c.b16 %v1050, %v1049
      %v1060 = vpack.c.b16 %v1052, %v1051
      %1069 = vmatpush.bf16.msra.mxu0 %v1060
      %1070 = vmatpush.bf16.msra.mxu0 %v1059
      %1071 = vmatpush.bf16.msra.mxu0 %v1058
      %1072 = vmatpush.bf16.msra.mxu0 %v1057
      %1073 = vmatpush.bf16.msra.mxu0 %v1056
      %1074 = vmatpush.bf16.msra.mxu0 %v1055
      %1075 = vmatpush.bf16.msra.mxu0 %v1054
      %1076 = vmatpush.bf16.msra.mxu0 %v1053
      %1077 = vmatmul.bf16.gmra.mxu0 %v1000
      %v1078 = vpop.f32.mrf.mxu0
      %v1079 = vadd.f32 %v1019, %v1078
      %v1080 = vpop.f32.mrf.mxu0
      %1081 = vdwg.mxu0
      %1082 = vst [vmem:[#allocation12] sm:$0x3] %v1079
    $region89: #{tpu_custom_call.1} parent=1 // pred_fallthru
      _
    // Predicated region
    $region90: #{tpu_custom_call.1} parent=1 // pred_check
      _
    $region91: #{tpu_custom_call.1} parent=1 // pred_check_branch
      %1084 = sbr.rel (0) target = $region93
    $region92: #{tpu_custom_call.1} parent=1 // pred_region
      %1086 = vsyncadd [#allocation5], 0
      %s1088 = sshll.u32 [#allocation12], 4
      %s1089 = int_to_ptr.vmem [resolvable:$true] %s1088
      %s1090 = sshll.u32 %s15, 4
      %s1091 = int_to_ptr.hbm [resolvable:$true] %s1090
      %1093 = dma.vmem_to_hbm [thread:$0]  %s1089, 32, %s1091, [#allocation5]
    $region93: #{tpu_custom_call.1} parent=1 // pred_fallthru
      _
    // Predicated region
    $region94: #{tpu_custom_call.1} parent=1 // pred_check
      _
    $region95: #{tpu_custom_call.1} parent=1 // pred_check_branch
      %1095 = sbr.rel (0) target = $region97
    $region96: #{tpu_custom_call.1} parent=1 // pred_region
      %1097 = dma.done [#allocation5], 32
    $region97: #{tpu_custom_call.1} parent=1 // pred_fallthru
      _
    %1098 = vsyncpa [#allocation4], 1
    %1099 = vsyncpa [#allocation7], 1
    %1100 = vsyncpa [#allocation10], 1
    %1101 = vsyncpa [#allocation5], 1

</llo_original>
